<compile_context>
chip_gen: v5e
topology: v5e:2x2
jax: 0.10.0
libtpu: 0.0.40
codegen_flags: <defaults>
</compile_context>

<pallas_src>
import math
import numpy as np
import jax
import jax.numpy as jnp
from jax import lax
from jax.experimental import pallas as pl
from jax.experimental.pallas import tpu as pltpu

# The reference forward multiplies by the raw parameter (initialised to
# log(1/0.07)) directly -- it never calls .exp() on it.
LOGIT_SCALE = float(math.log(1.0 / 0.07))


# ---------------------------------------------------------------------------
# Kernel A: compress_layer 1x1 conv + normalize(Global) + numerator projection
#           + logit scale, all pre-folded into per-batch weights, as a single
#           spatially tiled GEMM with spatial on the lane axis.
# ---------------------------------------------------------------------------
def _make_compress_kernel(matmul_dtype):
    def kernel(x_ref, w_ref, b_ref, o_ref):
        x = x_ref[...].astype(matmul_dtype)                     # (Cin, tn)
        wf = w_ref[...].astype(matmul_dtype)                    # (C+Q, Cin)
        acc = jnp.dot(wf, x, preferred_element_type=jnp.float32)
        acc = acc + b_ref[...]                                  # (C+Q, 1) bcast
        o_ref[...] = acc.astype(o_ref.dtype)
    return kernel


def _pick_hw_tile(HW, max_tile=512):
    # Largest 128-multiple divisor of HW (<= max_tile); otherwise whole HW.
    # Realistic DINO/8 maps (HW=784, 3136) are not 128-multiples -> whole
    # block (still only a few MB); padding + slice-back would add a full HBM
    # round-trip, so we do not pad.
    best = None
    for cand in range(128, min(HW, max_tile) + 1, 128):
        if HW % cand == 0:
            best = cand
    return best if best is not None else HW


def compress_and_project(x_flat, w_fused, b_fused, matmul_dtype, inter_dtype,
                         hw_tile=None):
    """x_flat (B, Cin, HW), w_fused (B, C+Q, Cin), b_fused (B, C+Q)
    -> (B, C+Q, HW) in inter_dtype."""
    B, Cin, HW = x_flat.shape
    CQ = w_fused.shape[1]
    if hw_tile is None:
        tn = _pick_hw_tile(HW)
    else:
        assert HW % hw_tile == 0 and (hw_tile % 128 == 0 or hw_tile == HW)
        tn = hw_tile
    nt = HW // tn
    out_item = 2 if inter_dtype == jnp.bfloat16 else 4
    flops = 2 * B * CQ * Cin * HW
    bytes_accessed = (4 * B * Cin * HW + 4 * B * CQ * Cin + 4 * B * CQ
                      + out_item * B * CQ * HW)
    b3 = b_fused.reshape(B, CQ, 1)
    return pl.pallas_call(
        _make_compress_kernel(matmul_dtype),
        out_shape=jax.ShapeDtypeStruct((B, CQ, HW), inter_dtype),
        grid=(B, nt),
        in_specs=[
            pl.BlockSpec((None, Cin, tn), lambda b, j: (b, 0, j)),
            pl.BlockSpec((None, CQ, Cin), lambda b, j: (b, 0, 0)),
            pl.BlockSpec((None, CQ, 1), lambda b, j: (b, 0, 0)),
        ],
        out_specs=pl.BlockSpec((None, CQ, tn), lambda b, j: (b, 0, j)),
        compiler_params=pltpu.CompilerParams(
            dimension_semantics=("parallel", "parallel")),
        cost_estimate=pl.CostEstimate(flops=int(flops), transcendentals=0,
                                      bytes_accessed=int(bytes_accessed)),
    )(x_flat, w_fused, b3)


# ---------------------------------------------------------------------------
# Kernel B: separable bilinear x4 upsample (w-pass, transpose, h-pass) +
#           per-pixel F.normalize(Local, dim=1) + softmax over parts.
#           Tiled over the upsampled-column axis Wo.
# ---------------------------------------------------------------------------
def _make_part_distribution_kernel(C, Q, h, w, Ho, tWo, matmul_dtype):
    CQ = C + Q

    def kernel(lm_ref, uw_ref, uhT_ref, o_ref):
        # lm_ref:  (CQ, h, w)  compressed features (rows 0:C) + logit-scaled
        #                      numerators (rows C:C+Q), from Kernel A.
        # uw_ref:  (tWo, w)    rows of the 1-D bilinear matrix along w.
        # uhT_ref: (h, Ho)     transposed 1-D bilinear matrix along h.
        a = lm_ref[...].reshape(CQ * h, w).astype(matmul_dtype)
        uw = uw_ref[...].astype(matmul_dtype)
        # w-pass first (contract shared w axis): (CQ*h, w) x (tWo, w)^T
        t = lax.dot_general(a, uw, (((1,), (1,)), ((), ())),
                            preferred_element_type=jnp.float32)   # (CQ*h, tWo)
        # single in-VMEM relayout, at matmul precision (bf16 halves its bytes)
        t = t.astype(matmul_dtype).reshape(CQ, h, tWo)
        t = jnp.transpose(t, (0, 2, 1)).reshape(CQ * tWo, h)
        # h-pass: (CQ*tWo, h) @ (h, Ho)
        up = jnp.dot(t, uhT_ref[...].astype(matmul_dtype),
                     preferred_element_type=jnp.float32)
        up = up.reshape(CQ, tWo, Ho)
        feat = up[:C]                    # upsampled local features
        num = up[C:]                     # upsampled logit-scaled numerators
        ssq = jnp.sum(feat * feat, axis=0, keepdims=True)          # (1,tWo,Ho)
        inv = lax.rsqrt(jnp.maximum(ssq, 1e-24))                   # EUP rsqrt
        s = num * inv                    # LOGIT_SCALE already folded in
        s = s - jnp.max(s, axis=0, keepdims=True)                  # softmax/parts
        e = jnp.exp(s)
        denom = jnp.sum(e, axis=0, keepdims=True)
        o_ref[...] = e * pl.reciprocal(denom, approx=True)         # EUP recip
    return kernel


def _pick_wo_tile(Wo, CQ, Ho, budget_bytes=4 << 20):
    # Largest multiple-of-8 divisor of Wo keeping the f32 (CQ, tWo, Ho)
    # intermediate under ~4 MB; whole Wo if it already fits.
    max_rows = max(8, budget_bytes // (CQ * Ho * 4))
    if Wo <= max_rows:
        return Wo
    best = None
    for cand in range(8, Wo, 8):
        if Wo % cand == 0 and cand <= max_rows:
            best = cand
    return best if best is not None else Wo


def part_distribution(lm4, Uw, uhT, C, Q, matmul_dtype, wo_tile=None):
    """lm4 (B, C+Q, h, w), Uw (Wo, w), uhT (h, Ho) -> (B, Q, Wo, Ho)."""
    B, CQ, h, w = lm4.shape
    Wo = Uw.shape[0]
    Ho = uhT.shape[1]
    assert CQ == C + Q
    if wo_tile is None:
        tWo = _pick_wo_tile(Wo, CQ, Ho)
    else:
        assert Wo % wo_tile == 0 and (wo_tile % 8 == 0 or wo_tile == Wo)
        tWo = wo_tile
    nWo = Wo // tWo
    in_item = lm4.dtype.itemsize
    flops = B * (2 * CQ * h * w * Wo + 2 * CQ * Wo * h * Ho
                 + (3 * C + 7 * Q) * Ho * Wo)
    trans = B * Ho * Wo * (Q + 2)
    bytes_accessed = (in_item * B * CQ * h * w + 4 * (Wo * w + h * Ho)
                      + 4 * B * Q * Ho * Wo)
    return pl.pallas_call(
        _make_part_distribution_kernel(C, Q, h, w, Ho, tWo, matmul_dtype),
        out_shape=jax.ShapeDtypeStruct((B, Q, Wo, Ho), jnp.float32),
        grid=(B, nWo),
        in_specs=[
            pl.BlockSpec((None, CQ, h, w), lambda b, j: (b, 0, 0, 0)),
            pl.BlockSpec((tWo, w), lambda b, j: (j, 0)),
            pl.BlockSpec((h, Ho), lambda b, j: (0, 0)),
        ],
        out_specs=pl.BlockSpec((None, Q, tWo, Ho), lambda b, j: (b, 0, j, 0)),
        compiler_params=pltpu.CompilerParams(
            dimension_semantics=("parallel", "parallel")),
        cost_estimate=pl.CostEstimate(flops=int(flops),
                                      transcendentals=int(trans),
                                      bytes_accessed=int(bytes_accessed)),
    )(lm4, Uw, uhT)


# ---------------------------------------------------------------------------
# 1-D bilinear interpolation matrix (align_corners=False, matching
# F.interpolate(..., scale_factor=4.0, mode='bilinear')); the 2-D upsample is
# the separable product of the h- and w-matrices.
# ---------------------------------------------------------------------------
def bilinear_matrix(n_in, n_out):
    scale = n_in / n_out
    dst = np.arange(n_out, dtype=np.float64)
    src = (dst + 0.5) * scale - 0.5
    src = np.clip(src, 0.0, n_in - 1)
    lo = np.floor(src).astype(np.int64)
    hi = np.minimum(lo + 1, n_in - 1)
    w_hi = (src - lo).astype(np.float32)
    w_lo = (1.0 - w_hi).astype(np.float32)
    M = np.zeros((n_out, n_in), dtype=np.float32)
    M[np.arange(n_out), lo] += w_lo
    M[np.arange(n_out), hi] += w_hi
    return M


# ---------------------------------------------------------------------------
# Deterministic stand-ins for the external pretrained sub-networks
# ---------------------------------------------------------------------------
# TODO(synk): load_DINO('small', pretrain, 8) is an external pretrained ViT-s/8;
# replaced with a deterministic patch-embedding producing (B, 384, H/8, W/8).
def dino_backbone_stub(x_nchw, w_patch):
    B, C, H, W = x_nchw.shape
    p = 8
    x = x_nchw.reshape(B, C, H // p, p, W // p, p)
    x = jnp.transpose(x, (0, 2, 4, 1, 3, 5)).reshape(B, H // p, W // p, C * p * p)
    feat = jnp.einsum("bhwk,kd->bhwd", x, w_patch)
    return jnp.transpose(feat, (0, 3, 1, 2))  # (B, 384, H/8, W/8)


# TODO(synk): Get_vit_PartImage transformer is an external module; replaced with
# a deterministic stand-in producing (B, num_part, d_model) part tokens.
def transformer_stub(x_half_nchw, label, part_queries, w_glob):
    pooled = jnp.mean(x_half_nchw, axis=(2, 3))            # (B, 3)
    g = pooled @ w_glob                                    # (B, d_model)
    return part_queries[None, :, :] + g[:, None, :]        # (B, Q, d_model)


# ---------------------------------------------------------------------------
# Full inference forward (trainable=False path)
# ---------------------------------------------------------------------------
def unsupervised_part_forward(inp, label, params, matmul_dtype=jnp.float32,
                              hw_tile=None, wo_tile=None):
    inp_half = inp[:, :, ::2, ::2]             # F.interpolate(scale=0.5, 'nearest')
    local_raw = dino_backbone_stub(inp, params["w_dino"])            # (B, 384, h, w)
    global_feat = transformer_stub(inp_half, label,
                                   params["part_queries"],
                                   params["w_glob"])                 # (B, Q, 64)
    B, Cin, h, w = local_raw.shape
    C = params["w_comp"].shape[0]
    Q = global_feat.shape[1]
    use_bf16 = (matmul_dtype == jnp.bfloat16)
    inter_dtype = jnp.bfloat16 if use_bf16 else jnp.float32

    # Fold F.normalize(Global, dim=-1), the numerator projection g_n @ (Wc x + b)
    # and the logit scale into per-batch fused GEMM weights.  Exact because the
    # bilinear upsample is linear and per-channel.
    g = global_feat
    gn = g * lax.rsqrt(jnp.maximum(jnp.sum(g * g, axis=-1, keepdims=True), 1e-24))
    w_num = jnp.einsum("bqc,ci->bqi", gn, params["w_comp"]) * LOGIT_SCALE  # (B,Q,Cin)
    b_num = jnp.einsum("bqc,c->bq", gn, params["b_comp"]) * LOGIT_SCALE    # (B,Q)
    w_fused = jnp.concatenate(
        [jnp.broadcast_to(params["w_comp"][None], (B, C, Cin)), w_num], axis=1)
    b_fused = jnp.concatenate(
        [jnp.broadcast_to(params["b_comp"][None], (B, C)), b_num], axis=1)

    # Kernel A: one lane-dense tiled GEMM (compress conv + numerators).
    lm = compress_and_project(local_raw.reshape(B, Cin, h * w),
                              w_fused, b_fused, matmul_dtype, inter_dtype,
                              hw_tile)                               # (B, C+Q, h*w)
    # Kernel B consumes Kernel A's layout directly (free metadata reshape);
    # separable upsample (w-pass then h-pass) + normalize + softmax, tiled over Wo.
    out_t = part_distribution(lm.reshape(B, C + Q, h, w),
                              params["Uw"], params["uhT"], C, Q,
                              matmul_dtype, wo_tile)                 # (B, Q, Wo, Ho)
    # Only the tiny Q-channel result is relayouted back to (Ho, Wo).
    return jnp.transpose(out_t, (0, 1, 3, 2))                        # (B, Q, Ho, Wo)


# ---------------------------------------------------------------------------
def main():
    B = 2
    IMG_SIZE = 128         # small test size; DINO/8 feature map is 16x16
    num_part = 6           # includes the background part
    d_model = 64           # must match compress_layer output channels
    h = IMG_SIZE // 8
    w = h
    Ho, Wo = 4 * h, 4 * w

    key = jax.random.PRNGKey(0)
    k1, k2, k3, k4, k5, k6 = jax.random.split(key, 6)

    inp = jax.random.normal(k1, (B, 3, IMG_SIZE, IMG_SIZE), jnp.float32)
    label = jnp.zeros((B,), jnp.int32)

    w_dino = jax.random.normal(k2, (3 * 8 * 8, 384), jnp.float32) / math.sqrt(192.0)
    w_comp = jax.random.normal(k3, (64, 384), jnp.float32) / math.sqrt(384.0)
    b_comp = jax.random.normal(k4, (64,), jnp.float32) * 0.01
    part_queries = jax.random.normal(k5, (num_part, d_model), jnp.float32)
    w_glob = jax.random.normal(k6, (3, d_model), jnp.float32)

    Uh = bilinear_matrix(h, Ho)            # (Ho, h)
    Uw = bilinear_matrix(w, Wo)            # (Wo, w)

    params = dict(w_dino=w_dino, w_comp=w_comp, b_comp=b_comp,
                  part_queries=part_queries, w_glob=w_glob,
                  Uw=jnp.asarray(Uw), uhT=jnp.asarray(Uh.T))

    # ------- pure-JAX reference of the inference path (same stubs) ----------
    inp_half = inp[:, :, ::2, ::2]
    local_raw = dino_backbone_stub(inp, w_dino)
    lf = jnp.einsum("bchw,oc->bohw", local_raw, w_comp) + b_comp[None, :, None, None]
    lf_up = jnp.einsum("oi,bcij,pj->bcop", jnp.asarray(Uh), lf, jnp.asarray(Uw))
    gf = transformer_stub(inp_half, label, part_queries, w_glob)
    gn = gf / jnp.maximum(jnp.linalg.norm(gf, axis=-1, keepdims=True), 1e-12)
    ln = lf_up / jnp.maximum(jnp.linalg.norm(lf_up, axis=1, keepdims=True), 1e-12)
    logits = jnp.einsum("bqc,bchw->bqhw", gn, ln) * LOGIT_SCALE
    ref = jax.nn.softmax(logits, axis=1)

    # 1) f32, default (auto-tiled) path.  Tolerance covers the EUP approx
    #    reciprocal (~2^-12 relative) in the softmax denominator.
    out = jax.block_until_ready(unsupervised_part_forward(inp, label, params))
    assert out.shape == (B, num_part, Ho, Wo)
    np.testing.assert_allclose(np.asarray(out), np.asarray(ref),
                               rtol=5e-3, atol=1e-4)

    # 2) f32 with explicit spatial tiling on both kernels (exercises the
    #    multi-step grids: Kernel A lane tiles, Kernel B Wo tiles).
    out_tiled = jax.block_until_ready(
        unsupervised_part_forward(inp, label, params, hw_tile=128, wo_tile=16))
    np.testing.assert_allclose(np.asarray(out_tiled), np.asarray(ref),
                               rtol=5e-3, atol=1e-4)

    # 3) bf16 MXU operands + bf16 inter-kernel intermediate (f32 accumulation),
    #    the v6e/v7x recommendation; loose sanity tolerance.
    out_bf16 = jax.block_until_ready(
        unsupervised_part_forward(inp, label, params,
                                  matmul_dtype=jnp.bfloat16,
                                  hw_tile=128, wo_tile=16))
    assert out_bf16.shape == (B, num_part, Ho, Wo)
    assert bool(jnp.all(jnp.isfinite(out_bf16)))
    assert float(jnp.max(jnp.abs(out_bf16.astype(jnp.float32) - ref))) < 0.1

    print("KERNEL_OK")


if __name__ == "__main__":
    main()
</pallas_src>

<mosaic_0001>
module attributes {stable_mosaic.version = 11 : i64} {
  func.func @kernel(%arg0: i32, %arg1: i32, %arg2: memref<1x384x256xf32, #tpu.memory_space<vmem>>, %arg3: memref<1x70x384xf32, #tpu.memory_space<vmem>>, %arg4: memref<1x70x1xf32, #tpu.memory_space<vmem>>, %arg5: memref<1x70x256xf32, #tpu.memory_space<vmem>>) attributes {dimension_semantics = [#tpu.dimension_semantics<parallel>, #tpu.dimension_semantics<parallel>], iteration_bounds = array<i64: 2, 1>, scalar_prefetch = 0 : i64, scratch_operands = 0 : i64, tpu.core_type = #tpu.core_type<tc>, window_params = [{transform_indices = @transform_0, window_bounds = array<i64: 1, 384, 256>}, {transform_indices = @transform_1, window_bounds = array<i64: 1, 70, 384>}, {transform_indices = @transform_2, window_bounds = array<i64: 1, 70, 1>}, {transform_indices = @transform_3, window_bounds = array<i64: 1, 70, 256>}]} {
    %c0 = arith.constant 0 : index
    %c0_0 = arith.constant 0 : index
    %c0_1 = arith.constant 0 : index
    %0 = vector.load %arg2[%c0, %c0_0, %c0_1] : memref<1x384x256xf32, #tpu.memory_space<vmem>>, vector<1x384x256xf32>
    %1 = vector.shape_cast %0 : vector<1x384x256xf32> to vector<384x256xf32>
    %c0_2 = arith.constant 0 : index
    %c0_3 = arith.constant 0 : index
    %c0_4 = arith.constant 0 : index
    %2 = vector.load %arg3[%c0_2, %c0_3, %c0_4] : memref<1x70x384xf32, #tpu.memory_space<vmem>>, vector<1x70x384xf32>
    %3 = vector.shape_cast %2 : vector<1x70x384xf32> to vector<70x384xf32>
    %cst = arith.constant dense<0.000000e+00> : vector<70x256xf32>
    %4 = tpu.matmul %3, %1, %cst {dimension_numbers = #tpu.dot_dimension_numbers<[1], [0], [0], [1], [0, 0, 1, 1], [], []>} : vector<70x384xf32>, vector<384x256xf32>, vector<70x256xf32> -> vector<70x256xf32>
    %c0_5 = arith.constant 0 : index
    %c0_6 = arith.constant 0 : index
    %c0_7 = arith.constant 0 : index
    %5 = vector.load %arg4[%c0_5, %c0_6, %c0_7] : memref<1x70x1xf32, #tpu.memory_space<vmem>>, vector<1x70x1xf32>
    %6 = vector.shape_cast %5 : vector<1x70x1xf32> to vector<70x1xf32>
    %7 = vector.broadcast %6 : vector<70x1xf32> to vector<70x256xf32>
    %8 = arith.addf %4, %7 : vector<70x256xf32>
    %c0_8 = arith.constant 0 : index
    %c0_9 = arith.constant 0 : index
    %c0_10 = arith.constant 0 : index
    %9 = vector.load %arg5[%c0_8, %c0_9, %c0_10] : memref<1x70x256xf32, #tpu.memory_space<vmem>>, vector<1x70x256xf32>
    %10 = vector.shape_cast %9 : vector<1x70x256xf32> to vector<70x256xf32>
    %11 = vector.shape_cast %8 : vector<70x256xf32> to vector<1x70x256xf32>
    tpu.vector_store %arg5[%c0_8, %c0_9, %c0_10], %11 {strides = array<i32>} : memref<1x70x256xf32, #tpu.memory_space<vmem>>, vector<1x70x256xf32>,
    return
  }
  func.func @transform_0(%arg0: i32, %arg1: i32) -> (i32, i32, i32) {
    %c0_i32 = arith.constant 0 : i32
    %c0_i32_0 = arith.constant 0 : i32
    return %arg0, %c0_i32, %arg1 : i32, i32, i32
  }
  func.func @transform_1(%arg0: i32, %arg1: i32) -> (i32, i32, i32) {
    %c0_i32 = arith.constant 0 : i32
    %c0_i32_0 = arith.constant 0 : i32
    %c0_i32_1 = arith.constant 0 : i32
    return %arg0, %c0_i32, %c0_i32_0 : i32, i32, i32
  }
  func.func @transform_2(%arg0: i32, %arg1: i32) -> (i32, i32, i32) {
    %c0_i32 = arith.constant 0 : i32
    %c0_i32_0 = arith.constant 0 : i32
    %c0_i32_1 = arith.constant 0 : i32
    return %arg0, %c0_i32, %c0_i32_0 : i32, i32, i32
  }
  func.func @transform_3(%arg0: i32, %arg1: i32) -> (i32, i32, i32) {
    %c0_i32 = arith.constant 0 : i32
    %c0_i32_0 = arith.constant 0 : i32
    return %arg0, %c0_i32, %arg1 : i32, i32, i32
  }
}

</mosaic_0001>

<llo_original>
// kernel: tpu_custom_call.1
$region0: #{tpu_custom_call.1}
  #allocation0 [shape = 'u32[]', space=smem, size = 0x4, offset = 0x4, fixed_abs, tag = 'smem constant byte address 0x4 - core index']
  #allocation1 [shape = 'u32[72,128]{1,0:T(1,128)}', space=vmem, size = 0x9000, scoped, tag = 'internal scratch']
  %s0 = inlined_call_operand.hbm [shape: f32[2,384,256], index: 0, kind: input, shape index: {}]
  %s1 = inlined_call_operand.vmem [shape: f32[2,70,384], index: 1, kind: input, shape index: {}]
  %s2 = inlined_call_operand.vmem [shape: f32[2,70,1], index: 2, kind: input, shape index: {}]
  %s3 = inlined_call_operand.vmem [shape: f32[2,70,256], index: 3, kind: output, shape index: {}]
  %s4 = sld [smem:[#allocation0]]
  $region49: #{tpu_custom_call.1} parent=0
    _
  %s6 = ssub.s32 1, %s4
  %s7 = scalar_select 0, %s6, %s4
  $region1: #{tpu_custom_call.1} parent=0
    #allocation2 [shape = 'u8[786432]{0}', space=vmem, size = 0xc0000, scoped, tag = 'input window, operand 0']
    #allocation3 [shape = 's32[2]{0}', space=sflag, size = 0x8, scoped, tag = 'scoped memory for tpu_custom_call.1']
    %8 = vsyncpa [#allocation3], 0
    %s9 = scalar_lea.sflag [#allocation3], 1
    %10 = vsyncpa %s9, 0
    loop: start=0, step=1, limit=4
    $region2: #{tpu_custom_call.1} parent=1 // loop_pre_header
      _
    $region3: #{tpu_custom_call.1} parent=1 // loop_header
      %s12 = sphi 0, %s16
      %p13 = scmp.ge.s32.totalorder %s12, 4
      %s19 = sphi 0, %s31
      %s20 = sphi 0, %s27
      %s21 = sphi 0, %s19
      %s22 = sphi 0, %s20
      %s23 = sphi 0, %s21
      %s24 = sphi 0, %s22
      %s36 = sphi 0, %s38
      %s39 = sphi 0, %s36
      %s40 = sphi 0, %s39
      %s56 = sphi 0, %s40
      %s62 = sphi 0, %s64
      %s65 = sphi 0, %s62
      %s66 = sphi 0, %s65
      %s82 = sphi 0, %s66
      %s88 = sphi 0, %s90
      %s91 = sphi 0, %s88
      %s92 = sphi 0, %s91
      %s108 = sphi 0, %s92
      %s116 = sphi 0, %s118
      %s119 = sphi 0, %s116
      %s120 = sphi 0, %s119
      %s136 = sphi 0, %s120
    $region4: #{tpu_custom_call.1} parent=1 // loop_header_branch
      %15 = sbr.rel (%p13) target = $region8
    $region5: #{tpu_custom_call.1} parent=1 // loop_body
      %s17 = ssub.s32 %s12, 1
      %s18 = ssub.s32 %s12, 2
      %s25 = sadd.s32 1, %s20
      %p26 = scmp.ge.s32.totalorder %s25, 1
      %s27 = scalar_select %p26, 0, %s25
      %s28 = sadd.s32 1, %s19
      %s29 = scalar_select %p26, %s28, %s19
      %p30 = scmp.ge.s32.totalorder %s29, 2
      %s31 = scalar_select %p30, 0, %s29
      %s32 = ssub.s32 %s19, %s31
      %s33 = ssub.s32 %s20, %s27
      %s34 = sor.u32 %s32, %s33
      %p35 = scmp.eq.s32.totalorder %s34, 0
      %s37 = sadd.s32 %s36, 1
      %s38 = scalar_select %p35, %s36, %s37
      %p41 = pneg %p35
      %p42 = scmp.eq.s32.totalorder %s12, 1
      %p43 = por %p41, %p42
      %p44 = scmp.ne.s32.totalorder %s36, %s39
      %p45 = scmp.eq.s32.totalorder %s12, 0
      %p46 = por %p44, %p45
      %p47 = scmp.ne.s32.totalorder %s36, %s39
      %p48 = scmp.eq.s32.totalorder %s17, 1
      %p49 = por %p47, %p48
      %p50 = scmp.ne.s32.totalorder %s39, %s40
      %p51 = scmp.eq.s32.totalorder %s17, 0
      %p52 = por %p50, %p51
      %p53 = scmp.ne.s32.totalorder %s39, %s40
      %p54 = scmp.eq.s32.totalorder %s18, 1
      %p55 = por %p53, %p54
      %p57 = scmp.ne.s32.totalorder %s40, %s56
      %p58 = scmp.eq.s32.totalorder %s18, 0
      %p59 = por %p57, %p58
      %s60 = ssub.s32 %s19, %s31
      %p61 = scmp.eq.s32.totalorder %s60, 0
      %s63 = sadd.s32 %s62, 1
      %s64 = scalar_select %p61, %s62, %s63
      %p67 = pneg %p61
      %p68 = scmp.eq.s32.totalorder %s12, 1
      %p69 = por %p67, %p68
      %p70 = scmp.ne.s32.totalorder %s62, %s65
      %p71 = scmp.eq.s32.totalorder %s12, 0
      %p72 = por %p70, %p71
      %p73 = scmp.ne.s32.totalorder %s62, %s65
      %p74 = scmp.eq.s32.totalorder %s17, 1
      %p75 = por %p73, %p74
      %p76 = scmp.ne.s32.totalorder %s65, %s66
      %p77 = scmp.eq.s32.totalorder %s17, 0
      %p78 = por %p76, %p77
      %p79 = scmp.ne.s32.totalorder %s65, %s66
      %p80 = scmp.eq.s32.totalorder %s18, 1
      %p81 = por %p79, %p80
      %p83 = scmp.ne.s32.totalorder %s66, %s82
      %p84 = scmp.eq.s32.totalorder %s18, 0
      %p85 = por %p83, %p84
      %s86 = ssub.s32 %s19, %s31
      %p87 = scmp.eq.s32.totalorder %s86, 0
      %s89 = sadd.s32 %s88, 1
      %s90 = scalar_select %p87, %s88, %s89
      %p93 = pneg %p87
      %p94 = scmp.eq.s32.totalorder %s12, 1
      %p95 = por %p93, %p94
      %p96 = scmp.ne.s32.totalorder %s88, %s91
      %p97 = scmp.eq.s32.totalorder %s12, 0
      %p98 = por %p96, %p97
      %p99 = scmp.ne.s32.totalorder %s88, %s91
      %p100 = scmp.eq.s32.totalorder %s17, 1
      %p101 = por %p99, %p100
      %p102 = scmp.ne.s32.totalorder %s91, %s92
      %p103 = scmp.eq.s32.totalorder %s17, 0
      %p104 = por %p102, %p103
      %p105 = scmp.ne.s32.totalorder %s91, %s92
      %p106 = scmp.eq.s32.totalorder %s18, 1
      %p107 = por %p105, %p106
      %p109 = scmp.ne.s32.totalorder %s92, %s108
      %p110 = scmp.eq.s32.totalorder %s18, 0
      %p111 = por %p109, %p110
      %s112 = ssub.s32 %s19, %s31
      %s113 = ssub.s32 %s20, %s27
      %s114 = sor.u32 %s112, %s113
      %p115 = scmp.eq.s32.totalorder %s114, 0
      %s117 = sadd.s32 %s116, 1
      %s118 = scalar_select %p115, %s116, %s117
      %p121 = pneg %p115
      %p122 = scmp.eq.s32.totalorder %s12, 1
      %p123 = por %p121, %p122
      %p124 = scmp.ne.s32.totalorder %s116, %s119
      %p125 = scmp.eq.s32.totalorder %s12, 0
      %p126 = por %p124, %p125
      %p127 = scmp.ne.s32.totalorder %s116, %s119
      %p128 = scmp.eq.s32.totalorder %s17, 1
      %p129 = por %p127, %p128
      %p130 = scmp.ne.s32.totalorder %s119, %s120
      %p131 = scmp.eq.s32.totalorder %s17, 0
      %p132 = por %p130, %p131
      %p133 = scmp.ne.s32.totalorder %s119, %s120
      %p134 = scmp.eq.s32.totalorder %s18, 1
      %p135 = por %p133, %p134
      %p137 = scmp.ne.s32.totalorder %s120, %s136
      %p138 = scmp.eq.s32.totalorder %s18, 0
      %p139 = por %p137, %p138
      %p140 = scmp.le.s32.totalorder 1, %s12
      %p141 = scmp.lt.s32.totalorder %s12, 3
      %p142 = pnand %p140, %p141
      %p143 = pneg %p142
      // Predicated region
      $region9: #{tpu_custom_call.1} parent=5 // pred_check
        _
      $region10: #{tpu_custom_call.1} parent=5 // pred_check_branch
        %145 = sbr.rel (%p142) target = $region12
      $region11: #{tpu_custom_call.1} parent=5 // pred_region
        %s146 = ssub.s32 %s12, 1
      $region12: #{tpu_custom_call.1} parent=5 // pred_fallthru
        _
      %p147 = scmp.lt.s32.totalorder %s12, 2
      // Predicated region
      $region13: #{tpu_custom_call.1} parent=5 // pred_check
        %p148 = pneg %p147
      $region14: #{tpu_custom_call.1} parent=5 // pred_check_branch
        %150 = sbr.rel (%p148) target = $region16
      $region15: #{tpu_custom_call.1} parent=5 // pred_region
        // Predicated region
        $region17: #{tpu_custom_call.1} parent=15 // pred_check
          %p151 = pneg %p46
        $region18: #{tpu_custom_call.1} parent=15 // pred_check_branch
          %153 = sbr.rel (%p151) target = $region20
        $region19: #{tpu_custom_call.1} parent=15 // pred_region
          %s154 = sand.u32 %s36, 1
          %s155 = scalar_lea.sflag [#allocation3], %s154
          %s156 = sand.u32 %s36, 1
          %s157 = smul.addr %s156, 768
          %s158 = scalar_lea.vmem [#allocation2], %s157
          %s159 = smul.u32 2, %s20
          %161 = vsyncadd %s155, 0
          %s162 = smul.addr %s19, 96
          %s163 = sadd.s32 %s159, %s162
          %s164 = smul.addr %s163, 8
          %s165 = scalar_lea.hbm %s0, %s164
          %s166 = sshll.u32 %s165, 4
          %s167 = int_to_ptr.hbm [resolvable:$true] %s166
          %s168 = sshll.u32 %s158, 4
          %s169 = int_to_ptr.vmem [resolvable:$true] %s168
          %174 = dma.hbm_to_vmem [thread:$0]  %s167, 12288, %s169, %s155, 256, 256, 16
        $region20: #{tpu_custom_call.1} parent=15 // pred_fallthru
          _
        // Predicated region
        $region21: #{tpu_custom_call.1} parent=15 // pred_check
          %p175 = pneg %p72
        $region22: #{tpu_custom_call.1} parent=15 // pred_check_branch
          %177 = sbr.rel (%p175) target = $region24
        $region23: #{tpu_custom_call.1} parent=15 // pred_region
          %p178 = scmp.lt.s32.totalorder %s19, 1
          %s179 = scalar_select %p178, %s19, 1
          %s180 = smul.addr %s179, 27
          %s181 = smul.addr %s180, 8
          %s182 = scalar_lea.vmem %s1, %s181
        $region24: #{tpu_custom_call.1} parent=15 // pred_fallthru
          _
        // Predicated region
        $region25: #{tpu_custom_call.1} parent=15 // pred_check
          %p183 = pneg %p98
        $region26: #{tpu_custom_call.1} parent=15 // pred_check_branch
          %185 = sbr.rel (%p183) target = $region28
        $region27: #{tpu_custom_call.1} parent=15 // pred_region
          %p186 = scmp.lt.s32.totalorder %s19, 1
          %s187 = scalar_select %p186, %s19, 1
          %s188 = smul.addr %s187, 9
          %s189 = smul.addr %s188, 8
          %s190 = scalar_lea.vmem %s2, %s189
        $region28: #{tpu_custom_call.1} parent=15 // pred_fallthru
          _
      $region16: #{tpu_custom_call.1} parent=5 // pred_fallthru
        _
      %p191 = scmp.le.s32.totalorder 1, %s12
      %p192 = scmp.lt.s32.totalorder %s12, 3
      %p193 = pnand %p191, %p192
      %p194 = pneg %p193
      // Predicated region
      $region29: #{tpu_custom_call.1} parent=5 // pred_check
        _
      $region30: #{tpu_custom_call.1} parent=5 // pred_check_branch
        %196 = sbr.rel (%p193) target = $region32
      $region31: #{tpu_custom_call.1} parent=5 // pred_region
        %s197 = ssub.s32 %s12, 1
        %s198 = sand.u32 %s39, 1
        %s199 = scalar_lea.sflag [#allocation3], %s198
        %s200 = sand.u32 %s39, 1
        %s201 = smul.addr %s200, 768
        %s202 = scalar_lea.vmem [#allocation2], %s201
        // Predicated region
        $region33: #{tpu_custom_call.1} parent=31 // pred_check
          %p203 = pneg %p52
        $region34: #{tpu_custom_call.1} parent=31 // pred_check_branch
          %205 = sbr.rel (%p203) target = $region36
        $region35: #{tpu_custom_call.1} parent=31 // pred_region
          %207 = dma.done %s199, 12288
        $region36: #{tpu_custom_call.1} parent=31 // pred_fallthru
          _
        %s208 = sand.u32 %s39, 1
        %s209 = scalar_lea.sflag [#allocation3], %s208
        %s210 = sand.u32 %s39, 1
        %s211 = smul.addr %s210, 768
        %s212 = scalar_lea.vmem [#allocation2], %s211
        %p213 = pneg %p52
        %p214 = pneg %p49
        %p215 = scmp.lt.s32.totalorder %s21, 1
        %s216 = scalar_select %p215, %s21, 1
        %s217 = smul.addr %s216, 27
        %s218 = smul.addr %s217, 8
        %s219 = scalar_lea.vmem %s1, %s218
        %p220 = pneg %p78
        %p221 = pneg %p75
        %p222 = scmp.lt.s32.totalorder %s21, 1
        %s223 = scalar_select %p222, %s21, 1
        %s224 = smul.addr %s223, 9
        %s225 = smul.addr %s224, 8
        %s226 = scalar_lea.vmem %s2, %s225
        %p227 = pneg %p104
        %p228 = pneg %p101
        %p229 = pneg %p132
        %p230 = pneg %p129
        %s231 = smul.u32 2, %s22
        %p232 = scmp.lt.s32.totalorder %s21, 1
        %s233 = scalar_select %p232, %s21, 1
        %p234 = scmp.lt.s32.totalorder %s231, 1
        %s235 = scalar_select %p234, %s231, 1
        %s236 = smul.addr %s233, 18
        %s237 = sadd.s32 %s235, %s236
        %s238 = smul.addr %s237, 8
        %s239 = scalar_lea.vmem %s3, %s238
        %s240 = smul.u32 2, %s22
        %p241 = scmp.lt.s32.totalorder %s21, 1
        %s242 = scalar_select %p241, %s21, 1
        %s243 = smul.addr %s242, 27
        %s244 = smul.addr %s243, 8
        %s245 = scalar_lea.vmem %s1, %s244
        %p246 = scmp.lt.s32.totalorder %s21, 1
        %s247 = scalar_select %p246, %s21, 1
        %s248 = smul.addr %s247, 9
        %s249 = smul.addr %s248, 8
        %s250 = scalar_lea.vmem %s2, %s249
        %s251 = smul.u32 2, %s22
        %p252 = scmp.lt.s32.totalorder %s21, 1
        %s253 = scalar_select %p252, %s21, 1
        %p254 = scmp.lt.s32.totalorder %s251, 1
        %s255 = scalar_select %p254, %s251, 1
        %s256 = smul.addr %s253, 18
        %s257 = sadd.s32 %s255, %s256
        %s258 = smul.addr %s257, 8
        %s259 = scalar_lea.vmem %s3, %s258
        %s260 = smul.u32 2, %s22
        %v261 = vld [vmem:[%s202] sm:$0xff]
        %v262 = vld [vmem:[%s202 + $0x8] sm:$0xff]
        %v263 = vld [vmem:[%s202 + $0x10] sm:$0xff]
        %v264 = vld [vmem:[%s202 + $0x18] sm:$0xff]
        %v265 = vld [vmem:[%s202 + $0x20] sm:$0xff]
        %v266 = vld [vmem:[%s202 + $0x28] sm:$0xff]
        %v267 = vld [vmem:[%s202 + $0x30] sm:$0xff]
        %v268 = vld [vmem:[%s202 + $0x38] sm:$0xff]
        %v269 = vld [vmem:[%s202 + $0x40] sm:$0xff]
        %v270 = vld [vmem:[%s202 + $0x48] sm:$0xff]
        %v271 = vld [vmem:[%s202 + $0x50] sm:$0xff]
        %v272 = vld [vmem:[%s202 + $0x58] sm:$0xff]
        %v273 = vld [vmem:[%s202 + $0x60] sm:$0xff]
        %v274 = vld [vmem:[%s202 + $0x68] sm:$0xff]
        %v275 = vld [vmem:[%s202 + $0x70] sm:$0xff]
        %v276 = vld [vmem:[%s202 + $0x78] sm:$0xff]
        %v277 = vld [vmem:[%s202 + $0x80] sm:$0xff]
        %v278 = vld [vmem:[%s202 + $0x88] sm:$0xff]
        %v279 = vld [vmem:[%s202 + $0x90] sm:$0xff]
        %v280 = vld [vmem:[%s202 + $0x98] sm:$0xff]
        %v281 = vld [vmem:[%s202 + $0xa0] sm:$0xff]
        %v282 = vld [vmem:[%s202 + $0xa8] sm:$0xff]
        %v283 = vld [vmem:[%s202 + $0xb0] sm:$0xff]
        %v284 = vld [vmem:[%s202 + $0xb8] sm:$0xff]
        %v285 = vld [vmem:[%s202 + $0xc0] sm:$0xff]
        %v286 = vld [vmem:[%s202 + $0xc8] sm:$0xff]
        %v287 = vld [vmem:[%s202 + $0xd0] sm:$0xff]
        %v288 = vld [vmem:[%s202 + $0xd8] sm:$0xff]
        %v289 = vld [vmem:[%s202 + $0xe0] sm:$0xff]
        %v290 = vld [vmem:[%s202 + $0xe8] sm:$0xff]
        %v291 = vld [vmem:[%s202 + $0xf0] sm:$0xff]
        %v292 = vld [vmem:[%s202 + $0xf8] sm:$0xff]
        %v293 = vld [vmem:[%s202 + $0x100] sm:$0xff]
        %v294 = vld [vmem:[%s202 + $0x108] sm:$0xff]
        %v295 = vld [vmem:[%s202 + $0x110] sm:$0xff]
        %v296 = vld [vmem:[%s202 + $0x118] sm:$0xff]
        %v297 = vld [vmem:[%s202 + $0x120] sm:$0xff]
        %v298 = vld [vmem:[%s202 + $0x128] sm:$0xff]
        %v299 = vld [vmem:[%s202 + $0x130] sm:$0xff]
        %v300 = vld [vmem:[%s202 + $0x138] sm:$0xff]
        %v301 = vld [vmem:[%s202 + $0x140] sm:$0xff]
        %v302 = vld [vmem:[%s202 + $0x148] sm:$0xff]
        %v303 = vld [vmem:[%s202 + $0x150] sm:$0xff]
        %v304 = vld [vmem:[%s202 + $0x158] sm:$0xff]
        %v305 = vld [vmem:[%s202 + $0x160] sm:$0xff]
        %v306 = vld [vmem:[%s202 + $0x168] sm:$0xff]
        %v307 = vld [vmem:[%s202 + $0x170] sm:$0xff]
        %v308 = vld [vmem:[%s202 + $0x178] sm:$0xff]
        %v309 = vld [vmem:[%s202 + $0x180] sm:$0xff]
        %v310 = vld [vmem:[%s202 + $0x188] sm:$0xff]
        %v311 = vld [vmem:[%s202 + $0x190] sm:$0xff]
        %v312 = vld [vmem:[%s202 + $0x198] sm:$0xff]
        %v313 = vld [vmem:[%s202 + $0x1a0] sm:$0xff]
        %v314 = vld [vmem:[%s202 + $0x1a8] sm:$0xff]
        %v315 = vld [vmem:[%s202 + $0x1b0] sm:$0xff]
        %v316 = vld [vmem:[%s202 + $0x1b8] sm:$0xff]
        %v317 = vld [vmem:[%s202 + $0x1c0] sm:$0xff]
        %v318 = vld [vmem:[%s202 + $0x1c8] sm:$0xff]
        %v319 = vld [vmem:[%s202 + $0x1d0] sm:$0xff]
        %v320 = vld [vmem:[%s202 + $0x1d8] sm:$0xff]
        %v321 = vld [vmem:[%s202 + $0x1e0] sm:$0xff]
        %v322 = vld [vmem:[%s202 + $0x1e8] sm:$0xff]
        %v323 = vld [vmem:[%s202 + $0x1f0] sm:$0xff]
        %v324 = vld [vmem:[%s202 + $0x1f8] sm:$0xff]
        %v325 = vld [vmem:[%s202 + $0x200] sm:$0xff]
        %v326 = vld [vmem:[%s202 + $0x208] sm:$0xff]
        %v327 = vld [vmem:[%s202 + $0x210] sm:$0xff]
        %v328 = vld [vmem:[%s202 + $0x218] sm:$0xff]
        %v329 = vld [vmem:[%s202 + $0x220] sm:$0xff]
        %v330 = vld [vmem:[%s202 + $0x228] sm:$0xff]
        %v331 = vld [vmem:[%s202 + $0x230] sm:$0xff]
        %v332 = vld [vmem:[%s202 + $0x238] sm:$0xff]
        %v333 = vld [vmem:[%s202 + $0x240] sm:$0xff]
        %v334 = vld [vmem:[%s202 + $0x248] sm:$0xff]
        %v335 = vld [vmem:[%s202 + $0x250] sm:$0xff]
        %v336 = vld [vmem:[%s202 + $0x258] sm:$0xff]
        %v337 = vld [vmem:[%s202 + $0x260] sm:$0xff]
        %v338 = vld [vmem:[%s202 + $0x268] sm:$0xff]
        %v339 = vld [vmem:[%s202 + $0x270] sm:$0xff]
        %v340 = vld [vmem:[%s202 + $0x278] sm:$0xff]
        %v341 = vld [vmem:[%s202 + $0x280] sm:$0xff]
        %v342 = vld [vmem:[%s202 + $0x288] sm:$0xff]
        %v343 = vld [vmem:[%s202 + $0x290] sm:$0xff]
        %v344 = vld [vmem:[%s202 + $0x298] sm:$0xff]
        %v345 = vld [vmem:[%s202 + $0x2a0] sm:$0xff]
        %v346 = vld [vmem:[%s202 + $0x2a8] sm:$0xff]
        %v347 = vld [vmem:[%s202 + $0x2b0] sm:$0xff]
        %v348 = vld [vmem:[%s202 + $0x2b8] sm:$0xff]
        %v349 = vld [vmem:[%s202 + $0x2c0] sm:$0xff]
        %v350 = vld [vmem:[%s202 + $0x2c8] sm:$0xff]
        %v351 = vld [vmem:[%s202 + $0x2d0] sm:$0xff]
        %v352 = vld [vmem:[%s202 + $0x2d8] sm:$0xff]
        %v353 = vld [vmem:[%s202 + $0x2e0] sm:$0xff]
        %v354 = vld [vmem:[%s202 + $0x2e8] sm:$0xff]
        %v355 = vld [vmem:[%s202 + $0x2f0] sm:$0xff]
        %v356 = vld [vmem:[%s202 + $0x2f8] sm:$0xff]
        %v357 = vld [vmem:[%s245] sm:$0xff]
        %v358 = vld [vmem:[%s245 + $0x8] sm:$0xff]
        %v359 = vld [vmem:[%s245 + $0x10] sm:$0xff]
        %v360 = vld [vmem:[%s245 + $0x18] sm:$0xff]
        %v361 = vld [vmem:[%s245 + $0x20] sm:$0xff]
        %v362 = vld [vmem:[%s245 + $0x28] sm:$0xff]
        %v363 = vld [vmem:[%s245 + $0x30] sm:$0xff]
        %v364 = vld [vmem:[%s245 + $0x38] sm:$0xff]
        %v365 = vld [vmem:[%s245 + $0x40] sm:$0xff]
        %v366 = vld [vmem:[%s245 + $0x48] sm:$0xff]
        %v367 = vld [vmem:[%s245 + $0x50] sm:$0xff]
        %v368 = vld [vmem:[%s245 + $0x58] sm:$0xff]
        %v369 = vld [vmem:[%s245 + $0x60] sm:$0xff]
        %v370 = vld [vmem:[%s245 + $0x68] sm:$0xff]
        %v371 = vld [vmem:[%s245 + $0x70] sm:$0xff]
        %v372 = vld [vmem:[%s245 + $0x78] sm:$0xff]
        %v373 = vld [vmem:[%s245 + $0x80] sm:$0xff]
        %v374 = vld [vmem:[%s245 + $0x88] sm:$0xff]
        %v375 = vld [vmem:[%s245 + $0x90] sm:$0xff]
        %v376 = vld [vmem:[%s245 + $0x98] sm:$0xff]
        %v377 = vld [vmem:[%s245 + $0xa0] sm:$0xff]
        %v378 = vld [vmem:[%s245 + $0xa8] sm:$0xff]
        %v379 = vld [vmem:[%s245 + $0xb0] sm:$0xff]
        %v380 = vld [vmem:[%s245 + $0xb8] sm:$0xff]
        %v381 = vld [vmem:[%s245 + $0xc0] sm:$0x3f]
        %v382 = vld [vmem:[%s245 + $0xc8] sm:$0x3f]
        %v383 = vld [vmem:[%s245 + $0xd0] sm:$0x3f]
        %v384 = vld [vmem:[%s250] sm:$0xff]
        %v385 = vld [vmem:[%s250 + $0x8] sm:$0xff]
        %v386 = vld [vmem:[%s250 + $0x10] sm:$0xff]
        %v387 = vld [vmem:[%s250 + $0x18] sm:$0xff]
        %v388 = vld [vmem:[%s250 + $0x20] sm:$0xff]
        %v389 = vld [vmem:[%s250 + $0x28] sm:$0xff]
        %v390 = vld [vmem:[%s250 + $0x30] sm:$0xff]
        %v391 = vld [vmem:[%s250 + $0x38] sm:$0xff]
        %v392 = vld [vmem:[%s250 + $0x40] sm:$0x3f]
        %394 = vset.pattern.permute.xlu0 0
        %395 = vperm.xlu0 %394, %v384
        %v396 = vpop.permute.xlu0 %395
        %399 = vset.pattern.permute.xlu0 0
        %400 = vperm.xlu0 %399, %v385
        %v401 = vpop.permute.xlu0 %400
        %404 = vset.pattern.permute.xlu0 0
        %405 = vperm.xlu0 %404, %v386
        %v406 = vpop.permute.xlu0 %405
        %409 = vset.pattern.permute.xlu0 0
        %410 = vperm.xlu0 %409, %v387
        %v411 = vpop.permute.xlu0 %410
        %414 = vset.pattern.permute.xlu0 0
        %415 = vperm.xlu0 %414, %v388
        %v416 = vpop.permute.xlu0 %415
        %419 = vset.pattern.permute.xlu0 0
        %420 = vperm.xlu0 %419, %v389
        %v421 = vpop.permute.xlu0 %420
        %424 = vset.pattern.permute.xlu0 0
        %425 = vperm.xlu0 %424, %v390
        %v426 = vpop.permute.xlu0 %425
        %429 = vset.pattern.permute.xlu0 0
        %430 = vperm.xlu0 %429, %v391
        %v431 = vpop.permute.xlu0 %430
        %434 = vset.pattern.permute.xlu0 0
        %435 = vperm.xlu0 %434, %v392
        %v436 = vpop.permute.xlu0 %435
        %438 = vmatpush.msra.mxu0 %v291
        %439 = vmatpush.msra.mxu0 %v289
        %440 = vmatpush.msra.mxu0 %v287
        %441 = vmatpush.msra.mxu0 %v285
        %442 = vmatpush.msra.mxu0 %v283
        %443 = vmatpush.msra.mxu0 %v281
        %444 = vmatpush.msra.mxu0 %v279
        %445 = vmatpush.msra.mxu0 %v277
        %446 = vmatpush.msra.mxu0 %v275
        %447 = vmatpush.msra.mxu0 %v273
        %448 = vmatpush.msra.mxu0 %v271
        %449 = vmatpush.msra.mxu0 %v269
        %450 = vmatpush.msra.mxu0 %v267
        %451 = vmatpush.msra.mxu0 %v265
        %452 = vmatpush.msra.mxu0 %v263
        %453 = vmatpush.msra.mxu0 %v261
        %454 = vmatmul.f32.gmra.mxu0 %v357
        %v455 = vpop.f32.mrf.mxu0
        %v456 = vadd.f32 %v396, %v455
        %457 = vmatmul.f32.gmra.mxu0 %v360
        %v458 = vpop.f32.mrf.mxu0
        %v459 = vadd.f32 %v401, %v458
        %460 = vmatmul.f32.gmra.mxu0 %v363
        %v461 = vpop.f32.mrf.mxu0
        %v462 = vadd.f32 %v406, %v461
        %463 = vmatmul.f32.gmra.mxu0 %v366
        %v464 = vpop.f32.mrf.mxu0
        %v465 = vadd.f32 %v411, %v464
        %466 = vmatmul.f32.gmra.mxu0 %v369
        %v467 = vpop.f32.mrf.mxu0
        %v468 = vadd.f32 %v416, %v467
        %469 = vmatmul.f32.gmra.mxu0 %v372
        %v470 = vpop.f32.mrf.mxu0
        %v471 = vadd.f32 %v421, %v470
        %472 = vmatmul.f32.gmra.mxu0 %v375
        %v473 = vpop.f32.mrf.mxu0
        %v474 = vadd.f32 %v426, %v473
        %475 = vmatmul.f32.gmra.mxu0 %v378
        %v476 = vpop.f32.mrf.mxu0
        %v477 = vadd.f32 %v431, %v476
        %478 = vmatmul.f32.gmra.mxu0 %v381
        %v479 = vpop.f32.mrf.mxu0
        %v480 = vadd.f32 %v436, %v479
        %481 = vdwg.mxu0
        %482 = vmatpush.msra.mxu0 %v323
        %483 = vmatpush.msra.mxu0 %v321
        %484 = vmatpush.msra.mxu0 %v319
        %485 = vmatpush.msra.mxu0 %v317
        %486 = vmatpush.msra.mxu0 %v315
        %487 = vmatpush.msra.mxu0 %v313
        %488 = vmatpush.msra.mxu0 %v311
        %489 = vmatpush.msra.mxu0 %v309
        %490 = vmatpush.msra.mxu0 %v307
        %491 = vmatpush.msra.mxu0 %v305
        %492 = vmatpush.msra.mxu0 %v303
        %493 = vmatpush.msra.mxu0 %v301
        %494 = vmatpush.msra.mxu0 %v299
        %495 = vmatpush.msra.mxu0 %v297
        %496 = vmatpush.msra.mxu0 %v295
        %497 = vmatpush.msra.mxu0 %v293
        %498 = vmatmul.f32.gmra.mxu0 %v358
        %v499 = vpop.f32.mrf.mxu0
        %v500 = vadd.f32 %v456, %v499
        %501 = vmatmul.f32.gmra.mxu0 %v361
        %v502 = vpop.f32.mrf.mxu0
        %v503 = vadd.f32 %v459, %v502
        %504 = vmatmul.f32.gmra.mxu0 %v364
        %v505 = vpop.f32.mrf.mxu0
        %v506 = vadd.f32 %v462, %v505
        %507 = vmatmul.f32.gmra.mxu0 %v367
        %v508 = vpop.f32.mrf.mxu0
        %v509 = vadd.f32 %v465, %v508
        %510 = vmatmul.f32.gmra.mxu0 %v370
        %v511 = vpop.f32.mrf.mxu0
        %v512 = vadd.f32 %v468, %v511
        %513 = vmatmul.f32.gmra.mxu0 %v373
        %v514 = vpop.f32.mrf.mxu0
        %v515 = vadd.f32 %v471, %v514
        %516 = vmatmul.f32.gmra.mxu0 %v376
        %v517 = vpop.f32.mrf.mxu0
        %v518 = vadd.f32 %v474, %v517
        %519 = vmatmul.f32.gmra.mxu0 %v379
        %v520 = vpop.f32.mrf.mxu0
        %v521 = vadd.f32 %v477, %v520
        %522 = vmatmul.f32.gmra.mxu0 %v382
        %v523 = vpop.f32.mrf.mxu0
        %v524 = vadd.f32 %v480, %v523
        %525 = vdwg.mxu0
        %526 = vmatpush.msra.mxu0 %v355
        %527 = vmatpush.msra.mxu0 %v353
        %528 = vmatpush.msra.mxu0 %v351
        %529 = vmatpush.msra.mxu0 %v349
        %530 = vmatpush.msra.mxu0 %v347
        %531 = vmatpush.msra.mxu0 %v345
        %532 = vmatpush.msra.mxu0 %v343
        %533 = vmatpush.msra.mxu0 %v341
        %534 = vmatpush.msra.mxu0 %v339
        %535 = vmatpush.msra.mxu0 %v337
        %536 = vmatpush.msra.mxu0 %v335
        %537 = vmatpush.msra.mxu0 %v333
        %538 = vmatpush.msra.mxu0 %v331
        %539 = vmatpush.msra.mxu0 %v329
        %540 = vmatpush.msra.mxu0 %v327
        %541 = vmatpush.msra.mxu0 %v325
        %542 = vmatmul.f32.gmra.mxu0 %v359
        %v543 = vpop.f32.mrf.mxu0
        %v544 = vadd.f32 %v500, %v543
        %545 = vmatmul.f32.gmra.mxu0 %v362
        %v546 = vpop.f32.mrf.mxu0
        %v547 = vadd.f32 %v503, %v546
        %548 = vmatmul.f32.gmra.mxu0 %v365
        %v549 = vpop.f32.mrf.mxu0
        %v550 = vadd.f32 %v506, %v549
        %551 = vmatmul.f32.gmra.mxu0 %v368
        %v552 = vpop.f32.mrf.mxu0
        %v553 = vadd.f32 %v509, %v552
        %554 = vmatmul.f32.gmra.mxu0 %v371
        %v555 = vpop.f32.mrf.mxu0
        %v556 = vadd.f32 %v512, %v555
        %557 = vmatmul.f32.gmra.mxu0 %v374
        %v558 = vpop.f32.mrf.mxu0
        %v559 = vadd.f32 %v515, %v558
        %560 = vmatmul.f32.gmra.mxu0 %v377
        %v561 = vpop.f32.mrf.mxu0
        %v562 = vadd.f32 %v518, %v561
        %563 = vmatmul.f32.gmra.mxu0 %v380
        %v564 = vpop.f32.mrf.mxu0
        %v565 = vadd.f32 %v521, %v564
        %566 = vmatmul.f32.gmra.mxu0 %v383
        %v567 = vpop.f32.mrf.mxu0
        %v568 = vadd.f32 %v524, %v567
        %569 = vdwg.mxu0
        %570 = vmatpush.msra.mxu0 %v292
        %571 = vmatpush.msra.mxu0 %v290
        %572 = vmatpush.msra.mxu0 %v288
        %573 = vmatpush.msra.mxu0 %v286
        %574 = vmatpush.msra.mxu0 %v284
        %575 = vmatpush.msra.mxu0 %v282
        %576 = vmatpush.msra.mxu0 %v280
        %577 = vmatpush.msra.mxu0 %v278
        %578 = vmatpush.msra.mxu0 %v276
        %579 = vmatpush.msra.mxu0 %v274
        %580 = vmatpush.msra.mxu0 %v272
        %581 = vmatpush.msra.mxu0 %v270
        %582 = vmatpush.msra.mxu0 %v268
        %583 = vmatpush.msra.mxu0 %v266
        %584 = vmatpush.msra.mxu0 %v264
        %585 = vmatpush.msra.mxu0 %v262
        %586 = vmatmul.f32.gmra.mxu0 %v357
        %v587 = vpop.f32.mrf.mxu0
        %v588 = vadd.f32 %v396, %v587
        %589 = vmatmul.f32.gmra.mxu0 %v360
        %v590 = vpop.f32.mrf.mxu0
        %v591 = vadd.f32 %v401, %v590
        %592 = vmatmul.f32.gmra.mxu0 %v363
        %v593 = vpop.f32.mrf.mxu0
        %v594 = vadd.f32 %v406, %v593
        %595 = vmatmul.f32.gmra.mxu0 %v366
        %v596 = vpop.f32.mrf.mxu0
        %v597 = vadd.f32 %v411, %v596
        %598 = vmatmul.f32.gmra.mxu0 %v369
        %v599 = vpop.f32.mrf.mxu0
        %v600 = vadd.f32 %v416, %v599
        %601 = vmatmul.f32.gmra.mxu0 %v372
        %v602 = vpop.f32.mrf.mxu0
        %v603 = vadd.f32 %v421, %v602
        %604 = vmatmul.f32.gmra.mxu0 %v375
        %v605 = vpop.f32.mrf.mxu0
        %v606 = vadd.f32 %v426, %v605
        %607 = vmatmul.f32.gmra.mxu0 %v378
        %v608 = vpop.f32.mrf.mxu0
        %v609 = vadd.f32 %v431, %v608
        %610 = vmatmul.f32.gmra.mxu0 %v381
        %v611 = vpop.f32.mrf.mxu0
        %v612 = vadd.f32 %v436, %v611
        %613 = vdwg.mxu0
        %614 = vmatpush.msra.mxu0 %v324
        %615 = vmatpush.msra.mxu0 %v322
        %616 = vmatpush.msra.mxu0 %v320
        %617 = vmatpush.msra.mxu0 %v318
        %618 = vmatpush.msra.mxu0 %v316
        %619 = vmatpush.msra.mxu0 %v314
        %620 = vmatpush.msra.mxu0 %v312
        %621 = vmatpush.msra.mxu0 %v310
        %622 = vmatpush.msra.mxu0 %v308
        %623 = vmatpush.msra.mxu0 %v306
        %624 = vmatpush.msra.mxu0 %v304
        %625 = vmatpush.msra.mxu0 %v302
        %626 = vmatpush.msra.mxu0 %v300
        %627 = vmatpush.msra.mxu0 %v298
        %628 = vmatpush.msra.mxu0 %v296
        %629 = vmatpush.msra.mxu0 %v294
        %630 = vmatmul.f32.gmra.mxu0 %v358
        %v631 = vpop.f32.mrf.mxu0
        %v632 = vadd.f32 %v588, %v631
        %633 = vmatmul.f32.gmra.mxu0 %v361
        %v634 = vpop.f32.mrf.mxu0
        %v635 = vadd.f32 %v591, %v634
        %636 = vmatmul.f32.gmra.mxu0 %v364
        %v637 = vpop.f32.mrf.mxu0
        %v638 = vadd.f32 %v594, %v637
        %639 = vmatmul.f32.gmra.mxu0 %v367
        %v640 = vpop.f32.mrf.mxu0
        %v641 = vadd.f32 %v597, %v640
        %642 = vmatmul.f32.gmra.mxu0 %v370
        %v643 = vpop.f32.mrf.mxu0
        %v644 = vadd.f32 %v600, %v643
        %645 = vmatmul.f32.gmra.mxu0 %v373
        %v646 = vpop.f32.mrf.mxu0
        %v647 = vadd.f32 %v603, %v646
        %648 = vmatmul.f32.gmra.mxu0 %v376
        %v649 = vpop.f32.mrf.mxu0
        %v650 = vadd.f32 %v606, %v649
        %651 = vmatmul.f32.gmra.mxu0 %v379
        %v652 = vpop.f32.mrf.mxu0
        %v653 = vadd.f32 %v609, %v652
        %654 = vmatmul.f32.gmra.mxu0 %v382
        %v655 = vpop.f32.mrf.mxu0
        %v656 = vadd.f32 %v612, %v655
        %657 = vdwg.mxu0
        %658 = vmatpush.msra.mxu0 %v356
        %659 = vmatpush.msra.mxu0 %v354
        %660 = vmatpush.msra.mxu0 %v352
        %661 = vmatpush.msra.mxu0 %v350
        %662 = vmatpush.msra.mxu0 %v348
        %663 = vmatpush.msra.mxu0 %v346
        %664 = vmatpush.msra.mxu0 %v344
        %665 = vmatpush.msra.mxu0 %v342
        %666 = vmatpush.msra.mxu0 %v340
        %667 = vmatpush.msra.mxu0 %v338
        %668 = vmatpush.msra.mxu0 %v336
        %669 = vmatpush.msra.mxu0 %v334
        %670 = vmatpush.msra.mxu0 %v332
        %671 = vmatpush.msra.mxu0 %v330
        %672 = vmatpush.msra.mxu0 %v328
        %673 = vmatpush.msra.mxu0 %v326
        %674 = vmatmul.f32.gmra.mxu0 %v359
        %v675 = vpop.f32.mrf.mxu0
        %v676 = vadd.f32 %v632, %v675
        %677 = vmatmul.f32.gmra.mxu0 %v362
        %v678 = vpop.f32.mrf.mxu0
        %v679 = vadd.f32 %v635, %v678
        %680 = vmatmul.f32.gmra.mxu0 %v365
        %v681 = vpop.f32.mrf.mxu0
        %v682 = vadd.f32 %v638, %v681
        %683 = vmatmul.f32.gmra.mxu0 %v368
        %v684 = vpop.f32.mrf.mxu0
        %v685 = vadd.f32 %v641, %v684
        %686 = vmatmul.f32.gmra.mxu0 %v371
        %v687 = vpop.f32.mrf.mxu0
        %v688 = vadd.f32 %v644, %v687
        %689 = vmatmul.f32.gmra.mxu0 %v374
        %v690 = vpop.f32.mrf.mxu0
        %v691 = vadd.f32 %v647, %v690
        %692 = vmatmul.f32.gmra.mxu0 %v377
        %v693 = vpop.f32.mrf.mxu0
        %v694 = vadd.f32 %v650, %v693
        %695 = vmatmul.f32.gmra.mxu0 %v380
        %v696 = vpop.f32.mrf.mxu0
        %v697 = vadd.f32 %v653, %v696
        %698 = vmatmul.f32.gmra.mxu0 %v383
        %v699 = vpop.f32.mrf.mxu0
        %v700 = vadd.f32 %v656, %v699
        %701 = vdwg.mxu0
        %702 = vst [vmem:[%s259] sm:$0xff] %v544
        %703 = vst [vmem:[%s259 + $0x8] sm:$0xff] %v676
        %704 = vst [vmem:[%s259 + $0x10] sm:$0xff] %v547
        %705 = vst [vmem:[%s259 + $0x18] sm:$0xff] %v679
        %706 = vst [vmem:[%s259 + $0x20] sm:$0xff] %v550
        %707 = vst [vmem:[%s259 + $0x28] sm:$0xff] %v682
        %708 = vst [vmem:[%s259 + $0x30] sm:$0xff] %v553
        %709 = vst [vmem:[%s259 + $0x38] sm:$0xff] %v685
        %710 = vst [vmem:[%s259 + $0x40] sm:$0xff] %v556
        %711 = vst [vmem:[%s259 + $0x48] sm:$0xff] %v688
        %712 = vst [vmem:[%s259 + $0x50] sm:$0xff] %v559
        %713 = vst [vmem:[%s259 + $0x58] sm:$0xff] %v691
        %714 = vst [vmem:[%s259 + $0x60] sm:$0xff] %v562
        %715 = vst [vmem:[%s259 + $0x68] sm:$0xff] %v694
        %716 = vst [vmem:[%s259 + $0x70] sm:$0xff] %v565
        %717 = vst [vmem:[%s259 + $0x78] sm:$0xff] %v697
        %718 = vst [vmem:[%s259 + $0x80] sm:$0x3f] %v568
        %719 = vst [vmem:[%s259 + $0x88] sm:$0x3f] %v700
        %s720 = smul.u32 2, %s22
        %p721 = scmp.lt.s32.totalorder %s21, 1
        %s722 = scalar_select %p721, %s21, 1
        %p723 = scmp.lt.s32.totalorder %s720, 1
        %s724 = scalar_select %p723, %s720, 1
        %s725 = smul.addr %s722, 18
        %s726 = sadd.s32 %s724, %s725
        %s727 = smul.addr %s726, 8
        %s728 = scalar_lea.vmem %s3, %s727
        // Predicated region
        $region37: #{tpu_custom_call.1} parent=31 // pred_check
          %p729 = pneg %p129
        $region38: #{tpu_custom_call.1} parent=31 // pred_check_branch
          %731 = sbr.rel (%p729) target = $region40
        $region39: #{tpu_custom_call.1} parent=31 // pred_region
          %s732 = smul.u32 2, %s22
        $region40: #{tpu_custom_call.1} parent=31 // pred_fallthru
          _
      $region32: #{tpu_custom_call.1} parent=5 // pred_fallthru
        _
      %p733 = scmp.le.s32.totalorder 2, %s12
      // Predicated region
      $region41: #{tpu_custom_call.1} parent=5 // pred_check
        %p734 = pneg %p733
      $region42: #{tpu_custom_call.1} parent=5 // pred_check_branch
        %736 = sbr.rel (%p734) target = $region44
      $region43: #{tpu_custom_call.1} parent=5 // pred_region
        %s737 = ssub.s32 %s12, 2
        // Predicated region
        $region45: #{tpu_custom_call.1} parent=43 // pred_check
          %p738 = pneg %p135
        $region46: #{tpu_custom_call.1} parent=43 // pred_check_branch
          %740 = sbr.rel (%p738) target = $region48
        $region47: #{tpu_custom_call.1} parent=43 // pred_region
          %s741 = smul.u32 2, %s24
          %p742 = scmp.lt.s32.totalorder %s23, 1
          %s743 = scalar_select %p742, %s23, 1
          %p744 = scmp.lt.s32.totalorder %s741, 1
          %s745 = scalar_select %p744, %s741, 1
          %s746 = smul.addr %s743, 18
          %s747 = sadd.s32 %s745, %s746
          %s748 = smul.addr %s747, 8
          %s749 = scalar_lea.vmem %s3, %s748
        $region48: #{tpu_custom_call.1} parent=43 // pred_fallthru
          _
      $region44: #{tpu_custom_call.1} parent=5 // pred_fallthru
        _
    $region6: #{tpu_custom_call.1} parent=1 // loop_footer
      %s16 = sadd.s32 1, %s12
    $region7: #{tpu_custom_call.1} parent=1 // loop_footer_branch
      %11 = sbr.rel target = $region3
    $region8: #{tpu_custom_call.1} parent=1 // loop_exit
      _
    %750 = vsyncpa [#allocation3], 1
    %s751 = scalar_lea.sflag [#allocation3], 1
    %752 = vsyncpa %s751, 1

</llo_original>
